<compile_context>
chip_gen: v5e
topology: v5e:2x2
jax: 0.10.0
libtpu: 0.0.40
codegen_flags: <defaults>
</compile_context>

<pallas_src>
import functools

import jax
import jax.numpy as jnp
from jax.experimental import pallas as pl
from jax.experimental.pallas import tpu as pltpu


_LANE = 128
_DEFAULT_VMEM_CAP = 64 * 1024 * 1024   # conservative fallback (v7x per-TC)


# ---------------------------------------------------------------------------
# Generation-aware budgets
# ---------------------------------------------------------------------------
def _vmem_capacity_bytes():
    try:
        info = pltpu.get_tpu_info()
        cap = getattr(info, "vmem_capacity_bytes", None)
        if cap:
            return int(cap)
    except Exception:
        pass
    return _DEFAULT_VMEM_CAP


def _vmem_limit_bytes(vmem_cap):
    # Scoped-VMEM limit for the pallas_calls: 75% of physical capacity.
    return (vmem_cap * 3) // 4


def _max_fused_block_elems(itemsize, vmem_cap):
    # Per-element residency for a fused block: double-buffered in+out
    # (4 * itemsize) plus a possible f32 pooling temporary (4 bytes).
    # Keep ~2x headroom below physical VMEM for weights / compiler scratch.
    per_elem_bytes = 4 * itemsize + 4
    return max(1, (vmem_cap // 2) // per_elem_bytes)
    # -> ~13 MiB of f32 x per block on 128 MiB parts, ~6.7 MiB on v7x.


def _pick_batch_tile(B, C, HW, max_elems):
    bt = max(1, min(B, max_elems // (C * HW)))
    while B % bt:              # keep the grid exact (no ragged last block)
        bt -= 1
    return bt


def _divisors(n):
    ds = set()
    i = 1
    while i * i <= n:
        if n % i == 0:
            ds.add(i)
            ds.add(n // i)
        i += 1
    return sorted(ds)


def _pick_hw_tile(HW, C, itemsize, tile_budget):
    """Largest lane-dense (multiple-of-128) divisor of HW within the budget.

    Returns None when HW has no multiple-of-128 divisor (caller then prefers
    the fused path, which uses full-extent blocks and stays layout-legal).
    """
    max_tile = max(1, tile_budget // (C * itemsize))
    lane_divs = [d for d in _divisors(HW) if d % _LANE == 0]
    if not lane_divs:
        return None
    fitting = [d for d in lane_divs if d <= max_tile]
    return max(fitting) if fitting else min(lane_divs)


# ---------------------------------------------------------------------------
# Fused path: one grid step per batch tile, whole (bt, C, HW) slab resident.
# Minimal HBM traffic (1 read + 1 write of x).
# ---------------------------------------------------------------------------
def _se_fused_kernel(x_ref, w1_ref, w2_ref, o_ref, *, inv_hw):
    # x_ref/o_ref: (bt, C, HW); w1_ref: (Cr, C); w2_ref: (C, Cr)
    x = x_ref[...]

    # squeeze: f32-accumulated mean over the lane (spatial) axis.
    pooled = jnp.sum(x.astype(jnp.float32), axis=-1) * inv_hw           # (bt, C)

    # excitation: batched FC -> ReLU -> FC -> sigmoid (nn.Linear: y = p @ W^T).
    h = jnp.maximum(
        jnp.einsum("bc,rc->br", pooled, w1_ref[...],
                   preferred_element_type=jnp.float32), 0.0)            # (bt, Cr)
    y = jax.nn.sigmoid(
        jnp.einsum("br,cr->bc", h, w2_ref[...],
                   preferred_element_type=jnp.float32))                 # (bt, C)

    # scale: dominant sweep stays in the input dtype (no full-slab f32 temp).
    o_ref[...] = x * y.astype(x.dtype)[:, :, None]


def _se_fused(x3, fc1_w, fc2_w, bt, vmem_limit, donate_x):
    B, C, HW = x3.shape
    Cr = fc1_w.shape[0]
    return pl.pallas_call(
        functools.partial(_se_fused_kernel, inv_hw=1.0 / HW),
        out_shape=jax.ShapeDtypeStruct((B, C, HW), x3.dtype),
        grid_spec=pltpu.PrefetchScalarGridSpec(
            num_scalar_prefetch=0,
            grid=(B // bt,),
            in_specs=[
                pl.BlockSpec((bt, C, HW), lambda b: (b, 0, 0)),
                pl.BlockSpec((Cr, C), lambda b: (0, 0)),
                pl.BlockSpec((C, Cr), lambda b: (0, 0)),
            ],
            out_specs=pl.BlockSpec((bt, C, HW), lambda b: (b, 0, 0)),
        ),
        compiler_params=pltpu.CompilerParams(
            dimension_semantics=("parallel",),
            vmem_limit_bytes=vmem_limit,
        ),
        input_output_aliases=({0: 0} if donate_x else {}),
    )(x3, fc1_w, fc2_w)


# ---------------------------------------------------------------------------
# Two-pass path: pass 1 reduces spatial tiles into an f32 sigmoid gate, pass 2
# applies the gate tile-by-tile with lane-dense stores.  Costs one extra read
# of x but keeps blocks small and pipeline-friendly for very large spatial.
# ---------------------------------------------------------------------------
def _pool_excite_kernel(x_ref, w1_ref, w2_ref, gate_ref, acc_ref, *, inv_hw):
    # x_ref: (1, C, hw_tile); gate_ref: (1, C, 1) f32; acc_ref: (C, 1) f32.
    t = pl.program_id(1)

    @pl.when(t == 0)
    def _():
        acc_ref[...] = jnp.zeros_like(acc_ref)

    acc_ref[...] += jnp.sum(x_ref[0].astype(jnp.float32), axis=-1, keepdims=True)

    @pl.when(t == pl.num_programs(1) - 1)
    def _():
        pooled = acc_ref[...] * inv_hw                                          # (C, 1)
        h = jnp.maximum(
            jnp.dot(w1_ref[...], pooled, preferred_element_type=jnp.float32), 0.0)
        y = jax.nn.sigmoid(
            jnp.dot(w2_ref[...], h, preferred_element_type=jnp.float32))        # (C, 1)
        gate_ref[...] = y[None]                                                 # f32 gate


def _scale_kernel(x_ref, gate_ref, o_ref):
    # x_ref/o_ref: (1, C, hw_tile); gate_ref: (1, C, 1) f32.
    # f32 gate multiply (exact for f32 x, single rounding for bf16 x).
    o_ref[...] = (x_ref[...] * gate_ref[...]).astype(o_ref.dtype)


def _se_two_pass(x3, fc1_w, fc2_w, hw_tile, vmem_limit, donate_x):
    B, C, HW = x3.shape
    Cr = fc1_w.shape[0]
    T = HW // hw_tile

    # Pass 1: per-batch f32 gate = sigmoid(W2 @ relu(W1 @ pooled)), pooled over
    # all spatial tiles (output-resident gate across the "arbitrary" t axis).
    gate = pl.pallas_call(
        functools.partial(_pool_excite_kernel, inv_hw=1.0 / HW),
        out_shape=jax.ShapeDtypeStruct((B, C, 1), jnp.float32),
        grid_spec=pltpu.PrefetchScalarGridSpec(
            num_scalar_prefetch=0,
            grid=(B, T),
            in_specs=[
                pl.BlockSpec((1, C, hw_tile), lambda b, t: (b, 0, t)),
                pl.BlockSpec((Cr, C), lambda b, t: (0, 0)),
                pl.BlockSpec((C, Cr), lambda b, t: (0, 0)),
            ],
            out_specs=pl.BlockSpec((1, C, 1), lambda b, t: (b, 0, 0)),
            scratch_shapes=[pltpu.VMEM((C, 1), jnp.float32)],
        ),
        compiler_params=pltpu.CompilerParams(
            dimension_semantics=("parallel", "arbitrary"),
            vmem_limit_bytes=vmem_limit,
        ),
    )(x3, fc1_w, fc2_w)

    # Pass 2: tiled elementwise scale, fully parallel grid, lane-dense stores.
    out3 = pl.pallas_call(
        _scale_kernel,
        out_shape=jax.ShapeDtypeStruct((B, C, HW), x3.dtype),
        grid_spec=pltpu.PrefetchScalarGridSpec(
            num_scalar_prefetch=0,
            grid=(B, T),
            in_specs=[
                pl.BlockSpec((1, C, hw_tile), lambda b, t: (b, 0, t)),
                pl.BlockSpec((1, C, 1), lambda b, t: (b, 0, 0)),
            ],
            out_specs=pl.BlockSpec((1, C, hw_tile), lambda b, t: (b, 0, t)),
        ),
        compiler_params=pltpu.CompilerParams(
            dimension_semantics=("parallel", "parallel"),
            vmem_limit_bytes=vmem_limit,
        ),
        input_output_aliases=({0: 0} if donate_x else {}),
    )(x3, gate)
    return out3


# ---------------------------------------------------------------------------
# Public wrapper
# ---------------------------------------------------------------------------
def squeeze_excitation(x_nchw, fc1_w, fc2_w, *, two_pass=None, hw_tile=None,
                       donate_x=False):
    """SqueezeExcitation forward.

    x_nchw: (B, C, H, W); fc1_w: (C//r, C); fc2_w: (C, C//r) (nn.Linear layout).
    two_pass: None = auto (generation-aware VMEM budget), True/False = force.
    hw_tile:  optional spatial tile override for the two-pass path (divides H*W).
    donate_x: alias x with the output buffer (only if the caller no longer
              needs x) -- halves the HBM footprint of this op.
    """
    B, C, H, W = x_nchw.shape
    HW = H * W
    itemsize = x_nchw.dtype.itemsize
    x3 = x_nchw.reshape(B, C, HW)

    vmem_cap = _vmem_capacity_bytes()
    vmem_limit = _vmem_limit_bytes(vmem_cap)
    max_fused_elems = _max_fused_block_elems(itemsize, vmem_cap)
    tile_budget = vmem_cap // 16        # 8 MiB on 128-MiB parts, 4 MiB on v7x

    # Auto decision: stay fused (2x HBM traffic) whenever a single-batch slab
    # fits the generation-aware per-block budget; two-pass costs 3x traffic.
    if two_pass is None:
        two_pass = C * HW > max_fused_elems

    if two_pass:
        if hw_tile is None:
            hw_tile = _pick_hw_tile(HW, C, itemsize, tile_budget)
            if hw_tile is None:
                # No lane-dense divisor of HW: fused full-extent blocks are the
                # layout-legal (and lower-traffic) choice.
                two_pass = False
        else:
            assert HW % hw_tile == 0, "hw_tile must divide H*W"

    if two_pass:
        out3 = _se_two_pass(x3, fc1_w, fc2_w, hw_tile, vmem_limit, donate_x)
    else:
        bt = _pick_batch_tile(B, C, HW, max_fused_elems)
        out3 = _se_fused(x3, fc1_w, fc2_w, bt, vmem_limit, donate_x)

    return out3.reshape(B, C, H, W)


def _reference(x_nchw, fc1_w, fc2_w):
    # Pure-JAX reference matching the PyTorch forward (nn.Linear weights (out, in)).
    pooled = jnp.mean(x_nchw.astype(jnp.float32), axis=(2, 3))       # (B, C)
    h = jnp.maximum(pooled @ fc1_w.T, 0.0)                           # (B, C//r)
    y = jax.nn.sigmoid(h @ fc2_w.T)                                  # (B, C)
    return (x_nchw.astype(jnp.float32) * y[:, :, None, None]).astype(x_nchw.dtype)


if __name__ == "__main__":
    # channel=64, reduction=16 -> hidden = 4
    B, C, reduction = 2, 64, 16
    Cr = C // reduction

    key = jax.random.PRNGKey(0)
    kx1, kx2, k1, k2 = jax.random.split(key, 4)

    bound1 = 1.0 / (C ** 0.5)
    bound2 = 1.0 / (Cr ** 0.5)
    fc1_w = jax.random.uniform(k1, (Cr, C), minval=-bound1, maxval=bound1,
                               dtype=jnp.float32)
    fc2_w = jax.random.uniform(k2, (C, Cr), minval=-bound2, maxval=bound2,
                               dtype=jnp.float32)

    # Path 1: fused batch-tiled kernel (small spatial -> auto-selected,
    # bt covers the whole batch in one multi-MiB-friendly block).
    x1 = jax.random.normal(kx1, (B, C, 16, 16), dtype=jnp.float32)
    out1 = jax.block_until_ready(squeeze_excitation(x1, fc1_w, fc2_w))
    ref1 = _reference(x1, fc1_w, fc2_w)
    assert out1.shape == x1.shape
    assert jnp.allclose(out1, ref1, atol=1e-5, rtol=1e-5), "fused path mismatch"

    # Path 2: two-pass kernels with a real multi-tile spatial reduction
    # (forced small tile so the accumulator init/accumulate/finalize path runs).
    x2 = jax.random.normal(kx2, (B, C, 32, 32), dtype=jnp.float32)
    out2 = jax.block_until_ready(
        squeeze_excitation(x2, fc1_w, fc2_w, two_pass=True, hw_tile=128))
    ref2 = _reference(x2, fc1_w, fc2_w)
    assert out2.shape == x2.shape
    assert jnp.allclose(out2, ref2, atol=1e-5, rtol=1e-5), "two-pass path mismatch"

    # Path 2b: two-pass with the automatic lane-dense tile picker.
    out2b = jax.block_until_ready(
        squeeze_excitation(x2, fc1_w, fc2_w, two_pass=True))
    assert jnp.allclose(out2b, ref2, atol=1e-5, rtol=1e-5), "auto-tile path mismatch"

    print("KERNEL_OK")
</pallas_src>

<mosaic_0001>
module attributes {stable_mosaic.version = 11 : i64} {
  func.func @_se_fused_kernel(%arg0: i32, %arg1: memref<2x64x256xf32, #tpu.memory_space<vmem>>, %arg2: memref<4x64xf32, #tpu.memory_space<vmem>>, %arg3: memref<64x4xf32, #tpu.memory_space<vmem>>, %arg4: memref<2x64x256xf32, #tpu.memory_space<vmem>>) attributes {dimension_semantics = [#tpu.dimension_semantics<parallel>], iteration_bounds = array<i64: 1>, scalar_prefetch = 0 : i64, scratch_operands = 0 : i64, tpu.core_type = #tpu.core_type<tc>, window_params = [{transform_indices = @transform_0, window_bounds = array<i64: 2, 64, 256>}, {pipeline_mode = #tpu.pipeline_mode<synchronous>, transform_indices = @transform_1, window_bounds = array<i64: 4, 64>}, {pipeline_mode = #tpu.pipeline_mode<synchronous>, transform_indices = @transform_2, window_bounds = array<i64: 64, 4>}, {transform_indices = @transform_3, window_bounds = array<i64: 2, 64, 256>}]} {
    %c0 = arith.constant 0 : index
    %c0_0 = arith.constant 0 : index
    %c0_1 = arith.constant 0 : index
    %0 = vector.load %arg1[%c0, %c0_0, %c0_1] : memref<2x64x256xf32, #tpu.memory_space<vmem>>, vector<2x64x256xf32>
    %cst = arith.constant dense<0.000000e+00> : vector<2x64xf32>
    %1 = vector.multi_reduction <add>, %0, %cst [2] : vector<2x64x256xf32> to vector<2x64xf32>
    %cst_2 = arith.constant 3.906250e-03 : f32
    %2 = vector.broadcast %cst_2 : f32 to vector<2x64xf32>
    %3 = arith.mulf %1, %2 : vector<2x64xf32>
    %c0_3 = arith.constant 0 : index
    %c0_4 = arith.constant 0 : index
    %4 = vector.load %arg2[%c0_3, %c0_4] : memref<4x64xf32, #tpu.memory_space<vmem>>, vector<4x64xf32>
    "tpu.trace_start"() <{level = 10 : i32, message = "bc,rc->br"}> : () -> ()
    %cst_5 = arith.constant dense<0.000000e+00> : vector<2x4xf32>
    %5 = tpu.matmul %3, %4, %cst_5 {dimension_numbers = #tpu.dot_dimension_numbers<[1], [1], [0], [0], [0, 0, 1, 0], [], []>} : vector<2x64xf32>, vector<4x64xf32>, vector<2x4xf32> -> vector<2x4xf32>
    "tpu.trace_stop"() : () -> ()
    %cst_6 = arith.constant 0.000000e+00 : f32
    %6 = vector.broadcast %cst_6 : f32 to vector<2x4xf32>
    %7 = arith.maximumf %5, %6 : vector<2x4xf32>
    %c0_7 = arith.constant 0 : index
    %c0_8 = arith.constant 0 : index
    %8 = vector.load %arg3[%c0_7, %c0_8] : memref<64x4xf32, #tpu.memory_space<vmem>>, vector<64x4xf32>
    "tpu.trace_start"() <{level = 10 : i32, message = "br,cr->bc"}> : () -> ()
    %cst_9 = arith.constant dense<0.000000e+00> : vector<2x64xf32>
    %9 = tpu.matmul %7, %8, %cst_9 {dimension_numbers = #tpu.dot_dimension_numbers<[1], [1], [0], [0], [0, 0, 1, 0], [], []>} : vector<2x4xf32>, vector<64x4xf32>, vector<2x64xf32> -> vector<2x64xf32>
    "tpu.trace_stop"() : () -> ()
    %10 = arith.negf %9 : vector<2x64xf32>
    %11 = math.exp %10 : vector<2x64xf32>
    %cst_10 = arith.constant 1.000000e+00 : f32
    %12 = vector.broadcast %cst_10 : f32 to vector<2x64xf32>
    %13 = arith.addf %12, %11 : vector<2x64xf32>
    %14 = arith.divf %12, %13 : vector<2x64xf32>
    %15 = vector.shape_cast %14 : vector<2x64xf32> to vector<2x64x1xf32>
    %16 = vector.broadcast %15 : vector<2x64x1xf32> to vector<2x64x256xf32>
    %17 = arith.mulf %0, %16 : vector<2x64x256xf32>
    %c0_11 = arith.constant 0 : index
    %c0_12 = arith.constant 0 : index
    %c0_13 = arith.constant 0 : index
    %18 = vector.load %arg4[%c0_11, %c0_12, %c0_13] : memref<2x64x256xf32, #tpu.memory_space<vmem>>, vector<2x64x256xf32>
    tpu.vector_store %arg4[%c0_11, %c0_12, %c0_13], %17 {strides = array<i32>} : memref<2x64x256xf32, #tpu.memory_space<vmem>>, vector<2x64x256xf32>,
    return
  }
  func.func @transform_0(%arg0: i32) -> (i32, i32, i32) {
    %c0_i32 = arith.constant 0 : i32
    %c0_i32_0 = arith.constant 0 : i32
    %c0_i32_1 = arith.constant 0 : i32
    return %arg0, %c0_i32, %c0_i32_0 : i32, i32, i32
  }
  func.func @transform_1(%arg0: i32) -> (i32, i32) {
    %c0_i32 = arith.constant 0 : i32
    %c0_i32_0 = arith.constant 0 : i32
    %c0_i32_1 = arith.constant 0 : i32
    return %c0_i32, %c0_i32_0 : i32, i32
  }
  func.func @transform_2(%arg0: i32) -> (i32, i32) {
    %c0_i32 = arith.constant 0 : i32
    %c0_i32_0 = arith.constant 0 : i32
    %c0_i32_1 = arith.constant 0 : i32
    return %c0_i32, %c0_i32_0 : i32, i32
  }
  func.func @transform_3(%arg0: i32) -> (i32, i32, i32) {
    %c0_i32 = arith.constant 0 : i32
    %c0_i32_0 = arith.constant 0 : i32
    %c0_i32_1 = arith.constant 0 : i32
    return %arg0, %c0_i32, %c0_i32_0 : i32, i32, i32
  }
}

</mosaic_0001>

<llo_original>
// kernel: tpu_custom_call.1
$region0: #{tpu_custom_call.1}
  #allocation0 [shape = 'u32[]', space=smem, size = 0x4, offset = 0x4, fixed_abs, tag = 'smem constant byte address 0x4 - core index']
  #allocation1 [shape = 'u32[72,128]{1,0:T(1,128)}', space=vmem, size = 0x9000, scoped, tag = 'internal scratch']
  %s0 = inlined_call_operand.hbm [shape: f32[2,64,256], index: 0, kind: input, shape index: {}]
  %s1 = inlined_call_operand.vmem [shape: f32[4,64], index: 1, kind: input, shape index: {}]
  %s2 = inlined_call_operand.vmem [shape: f32[64,4], index: 2, kind: input, shape index: {}]
  %s3 = inlined_call_operand.hbm [shape: f32[2,64,256], index: 3, kind: output, shape index: {}]
  %s4 = sld [smem:[#allocation0]]
  $region26: #{tpu_custom_call.1} parent=0
    _
  %s6 = ssub.s32 1, %s4
  %s7 = scalar_select 0, %s6, %s4
  $region1: #{tpu_custom_call.1} parent=0
    #allocation2 [shape = 'u8[131072]{0}', space=vmem, size = 0x20000, scoped, tag = 'input window, operand 0, single buffered']
    #allocation3 [shape = 's32[1]{0}', space=sflag, size = 0x4, scoped, tag = 'scoped memory for tpu_custom_call.1']
    #allocation4 [shape = 's32[1]{0}', space=sflag, size = 0x4, scoped, tag = 'scoped memory for tpu_custom_call.1']
    #allocation5 [shape = 'u8[131072]{0}', space=vmem, size = 0x20000, scoped, tag = 'output window, operand 0, single buffered']
    %8 = vsyncpa [#allocation3], 0
    %9 = vsyncpa [#allocation4], 0
    // Predicated region
    $region2: #{tpu_custom_call.1} parent=1 // pred_check
      _
    $region3: #{tpu_custom_call.1} parent=1 // pred_check_branch
      %11 = sbr.rel (0) target = $region5
    $region4: #{tpu_custom_call.1} parent=1 // pred_region
      %13 = vsyncadd [#allocation3], 0
      %s14 = sshll.u32 %s0, 4
      %s15 = int_to_ptr.hbm [resolvable:$true] %s14
      %s16 = sshll.u32 [#allocation2], 4
      %s17 = int_to_ptr.vmem [resolvable:$true] %s16
      %22 = dma.hbm_to_vmem [thread:$0]  %s15, 4096, %s17, [#allocation3], 256, 256, 16
    $region5: #{tpu_custom_call.1} parent=1 // pred_fallthru
      _
    // Predicated region
    $region6: #{tpu_custom_call.1} parent=1 // pred_check
      _
    $region7: #{tpu_custom_call.1} parent=1 // pred_check_branch
      %24 = sbr.rel (0) target = $region9
    $region8: #{tpu_custom_call.1} parent=1 // pred_region
      _
    $region9: #{tpu_custom_call.1} parent=1 // pred_fallthru
      _
    // Predicated region
    $region10: #{tpu_custom_call.1} parent=1 // pred_check
      _
    $region11: #{tpu_custom_call.1} parent=1 // pred_check_branch
      %26 = sbr.rel (0) target = $region13
    $region12: #{tpu_custom_call.1} parent=1 // pred_region
      _
    $region13: #{tpu_custom_call.1} parent=1 // pred_fallthru
      _
    // Predicated region
    $region14: #{tpu_custom_call.1} parent=1 // pred_check
      _
    $region15: #{tpu_custom_call.1} parent=1 // pred_check_branch
      %28 = sbr.rel (0) target = $region17
    $region16: #{tpu_custom_call.1} parent=1 // pred_region
      %30 = dma.done [#allocation3], 4096
    $region17: #{tpu_custom_call.1} parent=1 // pred_fallthru
      _
    %v31 = vld [vmem:[#allocation2] sm:$0xff]
    %v32 = vld [vmem:[#allocation2 + $0x8] sm:$0xff]
    %v33 = vld [vmem:[#allocation2 + $0x10] sm:$0xff]
    %v34 = vld [vmem:[#allocation2 + $0x18] sm:$0xff]
    %v35 = vld [vmem:[#allocation2 + $0x20] sm:$0xff]
    %v36 = vld [vmem:[#allocation2 + $0x28] sm:$0xff]
    %v37 = vld [vmem:[#allocation2 + $0x30] sm:$0xff]
    %v38 = vld [vmem:[#allocation2 + $0x38] sm:$0xff]
    %v39 = vld [vmem:[#allocation2 + $0x40] sm:$0xff]
    %v40 = vld [vmem:[#allocation2 + $0x48] sm:$0xff]
    %v41 = vld [vmem:[#allocation2 + $0x50] sm:$0xff]
    %v42 = vld [vmem:[#allocation2 + $0x58] sm:$0xff]
    %v43 = vld [vmem:[#allocation2 + $0x60] sm:$0xff]
    %v44 = vld [vmem:[#allocation2 + $0x68] sm:$0xff]
    %v45 = vld [vmem:[#allocation2 + $0x70] sm:$0xff]
    %v46 = vld [vmem:[#allocation2 + $0x78] sm:$0xff]
    %v47 = vld [vmem:[#allocation2 + $0x80] sm:$0xff]
    %v48 = vld [vmem:[#allocation2 + $0x88] sm:$0xff]
    %v49 = vld [vmem:[#allocation2 + $0x90] sm:$0xff]
    %v50 = vld [vmem:[#allocation2 + $0x98] sm:$0xff]
    %v51 = vld [vmem:[#allocation2 + $0xa0] sm:$0xff]
    %v52 = vld [vmem:[#allocation2 + $0xa8] sm:$0xff]
    %v53 = vld [vmem:[#allocation2 + $0xb0] sm:$0xff]
    %v54 = vld [vmem:[#allocation2 + $0xb8] sm:$0xff]
    %v55 = vld [vmem:[#allocation2 + $0xc0] sm:$0xff]
    %v56 = vld [vmem:[#allocation2 + $0xc8] sm:$0xff]
    %v57 = vld [vmem:[#allocation2 + $0xd0] sm:$0xff]
    %v58 = vld [vmem:[#allocation2 + $0xd8] sm:$0xff]
    %v59 = vld [vmem:[#allocation2 + $0xe0] sm:$0xff]
    %v60 = vld [vmem:[#allocation2 + $0xe8] sm:$0xff]
    %v61 = vld [vmem:[#allocation2 + $0xf0] sm:$0xff]
    %v62 = vld [vmem:[#allocation2 + $0xf8] sm:$0xff]
    %v63 = vadd.f32 %v31, %v32
    %64 = vadd.xlane.f32.xlu0 %v63
    %v65 = vpop.xlane.xlu0 %64
    %v66 = vadd.f32 %v33, %v34
    %67 = vadd.xlane.f32.xlu0 %v66
    %v68 = vpop.xlane.xlu0 %67
    %v69 = vadd.f32 %v35, %v36
    %70 = vadd.xlane.f32.xlu0 %v69
    %v71 = vpop.xlane.xlu0 %70
    %v72 = vadd.f32 %v37, %v38
    %73 = vadd.xlane.f32.xlu0 %v72
    %v74 = vpop.xlane.xlu0 %73
    %v75 = vadd.f32 %v39, %v40
    %76 = vadd.xlane.f32.xlu0 %v75
    %v77 = vpop.xlane.xlu0 %76
    %v78 = vadd.f32 %v41, %v42
    %79 = vadd.xlane.f32.xlu0 %v78
    %v80 = vpop.xlane.xlu0 %79
    %v81 = vadd.f32 %v43, %v44
    %82 = vadd.xlane.f32.xlu0 %v81
    %v83 = vpop.xlane.xlu0 %82
    %v84 = vadd.f32 %v45, %v46
    %85 = vadd.xlane.f32.xlu0 %v84
    %v86 = vpop.xlane.xlu0 %85
    %v87 = vadd.f32 %v47, %v48
    %88 = vadd.xlane.f32.xlu0 %v87
    %v89 = vpop.xlane.xlu0 %88
    %v90 = vadd.f32 %v49, %v50
    %91 = vadd.xlane.f32.xlu0 %v90
    %v92 = vpop.xlane.xlu0 %91
    %v93 = vadd.f32 %v51, %v52
    %94 = vadd.xlane.f32.xlu0 %v93
    %v95 = vpop.xlane.xlu0 %94
    %v96 = vadd.f32 %v53, %v54
    %97 = vadd.xlane.f32.xlu0 %v96
    %v98 = vpop.xlane.xlu0 %97
    %v99 = vadd.f32 %v55, %v56
    %100 = vadd.xlane.f32.xlu0 %v99
    %v101 = vpop.xlane.xlu0 %100
    %v102 = vadd.f32 %v57, %v58
    %103 = vadd.xlane.f32.xlu0 %v102
    %v104 = vpop.xlane.xlu0 %103
    %v105 = vadd.f32 %v59, %v60
    %106 = vadd.xlane.f32.xlu0 %v105
    %v107 = vpop.xlane.xlu0 %106
    %v108 = vadd.f32 %v61, %v62
    %109 = vadd.xlane.f32.xlu0 %v108
    %v110 = vpop.xlane.xlu0 %109
    %v111 = vmul.f32 %v65, 0.00390625
    %v112 = vmul.f32 %v68, 0.00390625
    %v113 = vmul.f32 %v71, 0.00390625
    %v114 = vmul.f32 %v74, 0.00390625
    %v115 = vmul.f32 %v77, 0.00390625
    %v116 = vmul.f32 %v80, 0.00390625
    %v117 = vmul.f32 %v83, 0.00390625
    %v118 = vmul.f32 %v86, 0.00390625
    %v119 = vmul.f32 %v89, 0.00390625
    %v120 = vmul.f32 %v92, 0.00390625
    %v121 = vmul.f32 %v95, 0.00390625
    %v122 = vmul.f32 %v98, 0.00390625
    %v123 = vmul.f32 %v101, 0.00390625
    %v124 = vmul.f32 %v104, 0.00390625
    %v125 = vmul.f32 %v107, 0.00390625
    %v126 = vmul.f32 %v110, 0.00390625
    %v127 = vld [vmem:[%s1] sm:$0xf]
    %v144 = vlaneseq
    %v145 = vand.u32 %v144, 127
    %v146 = vperm.slane %v111, %v145
    %v147 = vadd.s32 %v145, 4294967288
    %v148 = vperm.slane %v112, %v147
    %vm149 = vcmask 130112
    %v150 = vsel %vm149, %v148, %v146
    %v151 = vadd.s32 %v145, 4294967280
    %v152 = vperm.slane %v113, %v151
    %vm153 = vcmask 195712
    %v154 = vsel %vm153, %v152, %v150
    %v155 = vadd.s32 %v145, 4294967272
    %v156 = vperm.slane %v114, %v155
    %vm157 = vcmask 261312
    %v158 = vsel %vm157, %v156, %v154
    %v159 = vadd.s32 %v145, 4294967264
    %v160 = vperm.slane %v115, %v159
    %vm161 = vcmask 326912
    %v162 = vsel %vm161, %v160, %v158
    %v163 = vadd.s32 %v145, 4294967256
    %v164 = vperm.slane %v116, %v163
    %vm165 = vcmask 392512
    %v166 = vsel %vm165, %v164, %v162
    %v167 = vadd.s32 %v145, 4294967248
    %v168 = vperm.slane %v117, %v167
    %vm169 = vcmask 458112
    %v170 = vsel %vm169, %v168, %v166
    %v171 = vadd.s32 %v145, 4294967240
    %v172 = vperm.slane %v118, %v171
    %vm173 = vcmask 523712
    %v174 = vsel %vm173, %v172, %v170
    %v175 = vperm.slane %v119, %v145
    %v176 = vperm.slane %v120, %v147
    %v177 = vsel %vm149, %v176, %v175
    %v178 = vperm.slane %v121, %v151
    %v179 = vsel %vm153, %v178, %v177
    %v180 = vperm.slane %v122, %v155
    %v181 = vsel %vm157, %v180, %v179
    %v182 = vperm.slane %v123, %v159
    %v183 = vsel %vm161, %v182, %v181
    %v184 = vperm.slane %v124, %v163
    %v185 = vsel %vm165, %v184, %v183
    %v186 = vperm.slane %v125, %v167
    %v187 = vsel %vm169, %v186, %v185
    %v188 = vperm.slane %v126, %v171
    %v189 = vsel %vm173, %v188, %v187
    %vm190 = vcmask 1041409
    %v191 = vsel %vm190, %v189, %v174
    %vm192 = vcmask 523264
    %v193 = vsel %vm192, %v191, 0
    %v196 = vsel %vm192, %v127, 0
    %198 = vmatpush.xpose.msra.mxu0 0.0
    %199 = vmatpush.xpose.msra.mxu0 0.0
    %200 = vmatpush.xpose.msra.mxu0 0.0
    %201 = vmatpush.xpose.msra.mxu0 0.0
    %202 = vmatpush.xpose.msra.mxu0 0.0
    %203 = vmatpush.xpose.msra.mxu0 0.0
    %204 = vmatpush.xpose.msra.mxu0 0.0
    %205 = vmatpush.xpose.msra.mxu0 0.0
    %206 = vmatpush.xpose.msra.mxu0 0.0
    %207 = vmatpush.xpose.msra.mxu0 0.0
    %208 = vmatpush.xpose.msra.mxu0 0.0
    %209 = vmatpush.xpose.msra.mxu0 0.0
    %210 = vmatpush.xpose.msra.mxu0 0.0
    %211 = vmatpush.xpose.msra.mxu0 0.0
    %212 = vmatpush.xpose.msra.mxu0 0.0
    %213 = vmatpush.xpose.msra.mxu0 %v196
    %214 = vmatmul.f32.gmra.mxu0 %v193
    %v215 = vpop.f32.mrf.mxu0
    %v216 = vadd.f32 0.0, %v215
    %217 = vdwg.mxu0
    %v218 = vmax.f32 %v216, 0.0
    %v219 = vld [vmem:[%s2] sm:$0xff]
    %v220 = vld [vmem:[%s2 + $0x8] sm:$0xff]
    %v221 = vld [vmem:[%s2 + $0x10] sm:$0xff]
    %v222 = vld [vmem:[%s2 + $0x18] sm:$0xff]
    %v223 = vld [vmem:[%s2 + $0x20] sm:$0xff]
    %v224 = vld [vmem:[%s2 + $0x28] sm:$0xff]
    %v225 = vld [vmem:[%s2 + $0x30] sm:$0xff]
    %v226 = vld [vmem:[%s2 + $0x38] sm:$0xff]
    %vm227 = vcmask 31744
    %v229 = vsel %vm227, %v218, 0
    %v232 = vsel %vm227, %v219, 0
    %v235 = vsel %vm227, %v220, 0
    %v238 = vsel %vm227, %v221, 0
    %v241 = vsel %vm227, %v222, 0
    %v244 = vsel %vm227, %v223, 0
    %v247 = vsel %vm227, %v224, 0
    %v250 = vsel %vm227, %v225, 0
    %v253 = vsel %vm227, %v226, 0
    %255 = vmatpush.xpose.msra.mxu0 0.0
    %256 = vmatpush.xpose.msra.mxu0 0.0
    %257 = vmatpush.xpose.msra.mxu0 0.0
    %258 = vmatpush.xpose.msra.mxu0 0.0
    %259 = vmatpush.xpose.msra.mxu0 0.0
    %260 = vmatpush.xpose.msra.mxu0 0.0
    %261 = vmatpush.xpose.msra.mxu0 0.0
    %262 = vmatpush.xpose.msra.mxu0 0.0
    %263 = vmatpush.xpose.msra.mxu0 %v253
    %264 = vmatpush.xpose.msra.mxu0 %v250
    %265 = vmatpush.xpose.msra.mxu0 %v247
    %266 = vmatpush.xpose.msra.mxu0 %v244
    %267 = vmatpush.xpose.msra.mxu0 %v241
    %268 = vmatpush.xpose.msra.mxu0 %v238
    %269 = vmatpush.xpose.msra.mxu0 %v235
    %270 = vmatpush.xpose.msra.mxu0 %v232
    %271 = vmatmul.f32.gmra.mxu0 %v229
    %v272 = vpop.f32.mrf.mxu0
    %v273 = vadd.f32 0.0, %v272
    %274 = vdwg.mxu0
    %v275 = vxor.u32 %v273, 2147483648
    %v276 = vmul.f32 %v275, 1.442695
    %v277 = vpow.pop %v276
    %v278 = vadd.f32 %v277, 1.0
    %v279 = vrcp.pop %v278
    %v280 = vmul.f32 %v278, %v279
    %v281 = vsub.f32 1.0, %v280
    %v282 = vmul.f32 %v279, %v281
    %v283 = vadd.f32 %v279, %v282
    %vm284 = vweird.f32 %v278
    %vm285 = vweird.f32 %v279
    %vm286 = vmor %vm284, %vm285
    %v287 = vsel %vm286, %v279, %v283
    %v288 = vand.u32 2147483647, %v278
    %vm289 = vcmp.eq.f32.partialorder %v288, 8.507059e+37
    %v290 = vand.u32 %v278, 2147483648
    %v291 = vor.u32 1.1754944e-38, %v290
    %v292 = vsel %vm289, %v291, %v287
    %v293 = vmul.f32 1.0, %v292
    %v294 = vperm.slane %v293, 0
    %v295 = vlaneseq
    %v296 = vshrl.u32 %v295, 7
    %298 = vset.pattern.permute.xlu0 %v296
    %299 = vperm.xlu0 %298, %v294
    %v300 = vpop.permute.xlu0 %299
    %v301 = vlaneseq
    %v302 = vshrl.u32 %v301, 7
    %v303 = vadd.s32 %v302, 8
    %304 = vset.pattern.permute.xlu0 %v303
    %305 = vperm.xlu0 %304, %v294
    %v306 = vpop.permute.xlu0 %305
    %v307 = vlaneseq
    %v308 = vshrl.u32 %v307, 7
    %v309 = vadd.s32 %v308, 16
    %310 = vset.pattern.permute.xlu0 %v309
    %311 = vperm.xlu0 %310, %v294
    %v312 = vpop.permute.xlu0 %311
    %v313 = vlaneseq
    %v314 = vshrl.u32 %v313, 7
    %v315 = vadd.s32 %v314, 24
    %316 = vset.pattern.permute.xlu0 %v315
    %317 = vperm.xlu0 %316, %v294
    %v318 = vpop.permute.xlu0 %317
    %v319 = vlaneseq
    %v320 = vshrl.u32 %v319, 7
    %v321 = vadd.s32 %v320, 32
    %322 = vset.pattern.permute.xlu0 %v321
    %323 = vperm.xlu0 %322, %v294
    %v324 = vpop.permute.xlu0 %323
    %v325 = vlaneseq
    %v326 = vshrl.u32 %v325, 7
    %v327 = vadd.s32 %v326, 40
    %328 = vset.pattern.permute.xlu0 %v327
    %329 = vperm.xlu0 %328, %v294
    %v330 = vpop.permute.xlu0 %329
    %v331 = vlaneseq
    %v332 = vshrl.u32 %v331, 7
    %v333 = vadd.s32 %v332, 48
    %334 = vset.pattern.permute.xlu0 %v333
    %335 = vperm.xlu0 %334, %v294
    %v336 = vpop.permute.xlu0 %335
    %v337 = vlaneseq
    %v338 = vshrl.u32 %v337, 7
    %v339 = vadd.s32 %v338, 56
    %340 = vset.pattern.permute.xlu0 %v339
    %341 = vperm.xlu0 %340, %v294
    %v342 = vpop.permute.xlu0 %341
    %v343 = vperm.slane %v293, 1
    %v344 = vlaneseq
    %v345 = vshrl.u32 %v344, 7
    %347 = vset.pattern.permute.xlu0 %v345
    %348 = vperm.xlu0 %347, %v343
    %v349 = vpop.permute.xlu0 %348
    %v350 = vlaneseq
    %v351 = vshrl.u32 %v350, 7
    %v352 = vadd.s32 %v351, 8
    %353 = vset.pattern.permute.xlu0 %v352
    %354 = vperm.xlu0 %353, %v343
    %v355 = vpop.permute.xlu0 %354
    %v356 = vlaneseq
    %v357 = vshrl.u32 %v356, 7
    %v358 = vadd.s32 %v357, 16
    %359 = vset.pattern.permute.xlu0 %v358
    %360 = vperm.xlu0 %359, %v343
    %v361 = vpop.permute.xlu0 %360
    %v362 = vlaneseq
    %v363 = vshrl.u32 %v362, 7
    %v364 = vadd.s32 %v363, 24
    %365 = vset.pattern.permute.xlu0 %v364
    %366 = vperm.xlu0 %365, %v343
    %v367 = vpop.permute.xlu0 %366
    %v368 = vlaneseq
    %v369 = vshrl.u32 %v368, 7
    %v370 = vadd.s32 %v369, 32
    %371 = vset.pattern.permute.xlu0 %v370
    %372 = vperm.xlu0 %371, %v343
    %v373 = vpop.permute.xlu0 %372
    %v374 = vlaneseq
    %v375 = vshrl.u32 %v374, 7
    %v376 = vadd.s32 %v375, 40
    %377 = vset.pattern.permute.xlu0 %v376
    %378 = vperm.xlu0 %377, %v343
    %v379 = vpop.permute.xlu0 %378
    %v380 = vlaneseq
    %v381 = vshrl.u32 %v380, 7
    %v382 = vadd.s32 %v381, 48
    %383 = vset.pattern.permute.xlu0 %v382
    %384 = vperm.xlu0 %383, %v343
    %v385 = vpop.permute.xlu0 %384
    %v386 = vlaneseq
    %v387 = vshrl.u32 %v386, 7
    %v388 = vadd.s32 %v387, 56
    %389 = vset.pattern.permute.xlu0 %v388
    %390 = vperm.xlu0 %389, %v343
    %v391 = vpop.permute.xlu0 %390
    %v392 = vmul.f32 %v31, %v300
    %v393 = vmul.f32 %v32, %v300
    %v394 = vmul.f32 %v33, %v306
    %v395 = vmul.f32 %v34, %v306
    %v396 = vmul.f32 %v35, %v312
    %v397 = vmul.f32 %v36, %v312
    %v398 = vmul.f32 %v37, %v318
    %v399 = vmul.f32 %v38, %v318
    %v400 = vmul.f32 %v39, %v324
    %v401 = vmul.f32 %v40, %v324
    %v402 = vmul.f32 %v41, %v330
    %v403 = vmul.f32 %v42, %v330
    %v404 = vmul.f32 %v43, %v336
    %v405 = vmul.f32 %v44, %v336
    %v406 = vmul.f32 %v45, %v342
    %v407 = vmul.f32 %v46, %v342
    %v408 = vmul.f32 %v47, %v349
    %v409 = vmul.f32 %v48, %v349
    %v410 = vmul.f32 %v49, %v355
    %v411 = vmul.f32 %v50, %v355
    %v412 = vmul.f32 %v51, %v361
    %v413 = vmul.f32 %v52, %v361
    %v414 = vmul.f32 %v53, %v367
    %v415 = vmul.f32 %v54, %v367
    %v416 = vmul.f32 %v55, %v373
    %v417 = vmul.f32 %v56, %v373
    %v418 = vmul.f32 %v57, %v379
    %v419 = vmul.f32 %v58, %v379
    %v420 = vmul.f32 %v59, %v385
    %v421 = vmul.f32 %v60, %v385
    %v422 = vmul.f32 %v61, %v391
    %v423 = vmul.f32 %v62, %v391
    %424 = vst [vmem:[#allocation5] sm:$0xff] %v392
    %425 = vst [vmem:[#allocation5 + $0x8] sm:$0xff] %v393
    %426 = vst [vmem:[#allocation5 + $0x10] sm:$0xff] %v394
    %427 = vst [vmem:[#allocation5 + $0x18] sm:$0xff] %v395
    %428 = vst [vmem:[#allocation5 + $0x20] sm:$0xff] %v396
    %429 = vst [vmem:[#allocation5 + $0x28] sm:$0xff] %v397
    %430 = vst [vmem:[#allocation5 + $0x30] sm:$0xff] %v398
    %431 = vst [vmem:[#allocation5 + $0x38] sm:$0xff] %v399
    %432 = vst [vmem:[#allocation5 + $0x40] sm:$0xff] %v400
    %433 = vst [vmem:[#allocation5 + $0x48] sm:$0xff] %v401
    %434 = vst [vmem:[#allocation5 + $0x50] sm:$0xff] %v402
    %435 = vst [vmem:[#allocation5 + $0x58] sm:$0xff] %v403
    %436 = vst [vmem:[#allocation5 + $0x60] sm:$0xff] %v404
    %437 = vst [vmem:[#allocation5 + $0x68] sm:$0xff] %v405
    %438 = vst [vmem:[#allocation5 + $0x70] sm:$0xff] %v406
    %439 = vst [vmem:[#allocation5 + $0x78] sm:$0xff] %v407
    %440 = vst [vmem:[#allocation5 + $0x80] sm:$0xff] %v408
    %441 = vst [vmem:[#allocation5 + $0x88] sm:$0xff] %v409
    %442 = vst [vmem:[#allocation5 + $0x90] sm:$0xff] %v410
    %443 = vst [vmem:[#allocation5 + $0x98] sm:$0xff] %v411
    %444 = vst [vmem:[#allocation5 + $0xa0] sm:$0xff] %v412
    %445 = vst [vmem:[#allocation5 + $0xa8] sm:$0xff] %v413
    %446 = vst [vmem:[#allocation5 + $0xb0] sm:$0xff] %v414
    %447 = vst [vmem:[#allocation5 + $0xb8] sm:$0xff] %v415
    %448 = vst [vmem:[#allocation5 + $0xc0] sm:$0xff] %v416
    %449 = vst [vmem:[#allocation5 + $0xc8] sm:$0xff] %v417
    %450 = vst [vmem:[#allocation5 + $0xd0] sm:$0xff] %v418
    %451 = vst [vmem:[#allocation5 + $0xd8] sm:$0xff] %v419
    %452 = vst [vmem:[#allocation5 + $0xe0] sm:$0xff] %v420
    %453 = vst [vmem:[#allocation5 + $0xe8] sm:$0xff] %v421
    %454 = vst [vmem:[#allocation5 + $0xf0] sm:$0xff] %v422
    %455 = vst [vmem:[#allocation5 + $0xf8] sm:$0xff] %v423
    // Predicated region
    $region18: #{tpu_custom_call.1} parent=1 // pred_check
      _
    $region19: #{tpu_custom_call.1} parent=1 // pred_check_branch
      %457 = sbr.rel (0) target = $region21
    $region20: #{tpu_custom_call.1} parent=1 // pred_region
      %459 = vsyncadd [#allocation4], 0
      %s460 = sshll.u32 [#allocation5], 4
      %s461 = int_to_ptr.vmem [resolvable:$true] %s460
      %s462 = sshll.u32 %s3, 4
      %s463 = int_to_ptr.hbm [resolvable:$true] %s462
      %468 = dma.vmem_to_hbm [thread:$0]  %s461, 4096, %s463, [#allocation4], 256, 256, 16
    $region21: #{tpu_custom_call.1} parent=1 // pred_fallthru
      _
    // Predicated region
    $region22: #{tpu_custom_call.1} parent=1 // pred_check
      _
    $region23: #{tpu_custom_call.1} parent=1 // pred_check_branch
      %470 = sbr.rel (0) target = $region25
    $region24: #{tpu_custom_call.1} parent=1 // pred_region
      %472 = dma.done [#allocation4], 4096
    $region25: #{tpu_custom_call.1} parent=1 // pred_fallthru
      _
    %473 = vsyncpa [#allocation3], 1
    %474 = vsyncpa [#allocation4], 1

</llo_original>
